<compile_context>
chip_gen: v6e
topology: v6e:2x2x1
jax: 0.10.0
libtpu: 0.0.40
codegen_flags: <defaults>
</compile_context>

<pallas_src>
import functools
import math

import jax
import jax.numpy as jnp
from jax.experimental import pallas as pl
from jax.experimental.pallas import tpu as pltpu


# ----------------------------------------------------------------------------
# Generic tiled matmul kernel with resident B and fused epilogue:
#   acc += A_tile @ B[k*tk:(k+1)*tk, :]          (f32 accumulation)
#   out  = [relu](acc [+ bias]) [@ W2]           (epilogue on last k step)
# Grid = (M//tm, K//tk);  B / bias / W2 are fully VMEM-resident.
# ----------------------------------------------------------------------------
def _gcn_mm_kernel(*refs, tk, relu, has_bias, has_w2):
    a_ref, b_ref = refs[0], refs[1]
    idx = 2
    bias_ref = None
    w2_ref = None
    if has_bias:
        bias_ref = refs[idx]; idx += 1
    if has_w2:
        w2_ref = refs[idx]; idx += 1
    o_ref, acc_ref = refs[idx], refs[idx + 1]

    k = pl.program_id(1)

    @pl.when(k == 0)
    def _init():
        acc_ref[...] = jnp.zeros_like(acc_ref)

    koff = pl.multiple_of(k * tk, tk)
    acc_ref[...] += jnp.dot(
        a_ref[...], b_ref[pl.ds(koff, tk), :],
        preferred_element_type=jnp.float32,
    )

    @pl.when(k == pl.num_programs(1) - 1)
    def _finalize():
        r = acc_ref[...]
        if has_bias:
            r = r + bias_ref[...]                 # bias / epilogue stay f32
        if relu:
            r = jnp.maximum(r, 0.0)
        if has_w2:
            r = jnp.dot(r.astype(w2_ref.dtype), w2_ref[...],
                        preferred_element_type=jnp.float32)
        o_ref[...] = r.astype(o_ref.dtype)


def fused_gcn_matmul(a, b, bias=None, w2=None, *, relu=False,
                     out_dtype=jnp.float32, tm=512, tk=1024,
                     vmem_limit_bytes=32 * 1024 * 1024):
    """out = [relu](a @ b [+ bias]) [@ w2].

    a:(M,K) streamed in (tm,tk) tiles; b:(K,Nb), bias:(1,Nb), w2:(Nb,Nc) are
    fully VMEM-resident (narrow operands).  Requires M % tm == 0, K % tk == 0
    (callers pad).
    """
    M, K = a.shape
    Kb, Nb = b.shape
    assert K == Kb
    assert M % tm == 0 and K % tk == 0, (M, K, tm, tk)
    n_out = w2.shape[1] if w2 is not None else Nb
    grid = (M // tm, K // tk)

    in_specs = [
        pl.BlockSpec((tm, tk), lambda i, k: (i, k)),        # streamed A
        pl.BlockSpec((K, Nb), lambda i, k: (0, 0)),         # resident B (full K)
    ]
    operands = [a, b]
    if bias is not None:
        assert bias.shape == (1, Nb)
        in_specs.append(pl.BlockSpec((1, Nb), lambda i, k: (0, 0)))
        operands.append(bias)
    if w2 is not None:
        assert w2.shape[0] == Nb
        in_specs.append(pl.BlockSpec((Nb, n_out), lambda i, k: (0, 0)))
        operands.append(w2)

    isz = lambda x: jnp.dtype(x.dtype).itemsize
    flops = 2 * M * K * Nb + 2 * M * Nb + (2 * M * Nb * n_out if w2 is not None else 0)
    bytes_accessed = int(M * K * isz(a) + K * Nb * isz(b)
                         + M * n_out * jnp.dtype(out_dtype).itemsize)

    kernel = functools.partial(
        _gcn_mm_kernel, tk=tk, relu=relu,
        has_bias=bias is not None, has_w2=w2 is not None)

    return pl.pallas_call(
        kernel,
        out_shape=jax.ShapeDtypeStruct((M, n_out), out_dtype),
        grid_spec=pltpu.PrefetchScalarGridSpec(
            num_scalar_prefetch=0,
            grid=grid,
            in_specs=in_specs,
            out_specs=pl.BlockSpec((tm, n_out), lambda i, k: (i, 0)),
            scratch_shapes=[pltpu.VMEM((tm, Nb), jnp.float32)],
        ),
        compiler_params=pltpu.CompilerParams(
            dimension_semantics=("parallel", "arbitrary"),
            vmem_limit_bytes=vmem_limit_bytes),
        cost_estimate=pl.CostEstimate(
            flops=flops, transcendentals=0, bytes_accessed=bytes_accessed),
    )(*operands)


# ----------------------------------------------------------------------------
# GCN forward.
# ----------------------------------------------------------------------------
def _round_up(v, m):
    return ((v + m - 1) // m) * m


def gcn_forward(x, adj, w1, b1, w2, b2, *, tm=512, tk=1024,
                compute_dtype=jnp.bfloat16):
    N, F = x.shape
    H = w1.shape[1]
    C = w2.shape[1]
    assert adj.shape == (N, N)
    assert w1.shape == (F, H) and w2.shape == (H, C)
    assert b1.shape == (H,) and b2.shape == (C,)

    # --- tile / padding derivation (fixes the divisibility issue) -----------
    n128 = _round_up(N, 128)
    f128 = _round_up(F, 128)

    # Keep >=2 row tiles when the node dim allows it (v7x megacore sharding).
    if n128 >= 256:
        tm_cap = (n128 // 2) // 128 * 128
        tm_n = min(tm, tm_cap)
    else:
        tm_n = min(tm, n128)
    tk_n = min(tk, n128)          # reduction tile for the two adj aggregations
    tk_f = min(tk, f128)          # reduction tile for the feature transform

    # Node dim is both M (rows) and K (adjacency reduction): pad to a common
    # multiple of both tiles.  All tiles are multiples of 128 -> lane-dense.
    Np = _round_up(N, math.lcm(tm_n, tk_n))
    Fp = _round_up(F, tk_f)
    Hp = _round_up(H, 128)
    Cp = _round_up(C, 128)

    def pad2(a, r, c):
        return jnp.pad(a, ((0, r - a.shape[0]), (0, c - a.shape[1])))

    # bf16 MXU operands; accumulation stays f32 inside the kernels.
    x_p = pad2(x, Np, Fp).astype(compute_dtype)
    adj_p = pad2(adj, Np, Np).astype(compute_dtype)
    w1_p = pad2(w1, Fp, Hp).astype(compute_dtype)
    w2_p = pad2(w2, Hp, Cp).astype(compute_dtype)
    b1_p = jnp.pad(b1, (0, Hp - H)).reshape(1, Hp).astype(jnp.float32)
    b2_p = jnp.pad(b2, (0, Cp - C)).reshape(1, Cp).astype(jnp.float32)

    # ---- layer 1 feature transform: s1 = x @ W1 (no bias / relu) ----
    s1 = fused_gcn_matmul(x_p, w1_p, out_dtype=compute_dtype,
                          tm=tm_n, tk=tk_f)

    # ---- layer 1 aggregation fused with layer 2 transform:
    #      s2 = relu(adj @ s1 + b1) @ W2   (h1 never written to HBM) ----
    s2 = fused_gcn_matmul(adj_p, s1, bias=b1_p, w2=w2_p, relu=True,
                          out_dtype=compute_dtype, tm=tm_n, tk=tk_n)

    # dropout: identity in eval mode (training=False)

    # ---- layer 2 aggregation: out = adj @ s2 + b2 ----
    out = fused_gcn_matmul(adj_p, s2, bias=b2_p,
                           out_dtype=jnp.float32, tm=tm_n, tk=tk_n)

    return out[:N, :C]


# ----------------------------------------------------------------------------
# References.
# ----------------------------------------------------------------------------
def gcn_reference_f32(x, adj, w1, b1, w2, b2):
    h = jnp.maximum(adj @ (x @ w1) + b1, 0.0)
    return adj @ (h @ w2) + b2


def gcn_reference_bf16(x, adj, w1, b1, w2, b2):
    """Mirrors the kernel dataflow (bf16 operands, f32 accum, bf16 intermediates)."""
    bf = lambda a: a.astype(jnp.bfloat16)
    s1 = jnp.dot(bf(x), bf(w1), preferred_element_type=jnp.float32).astype(jnp.bfloat16)
    h1 = jnp.maximum(
        jnp.dot(bf(adj), s1, preferred_element_type=jnp.float32) + b1, 0.0
    ).astype(jnp.bfloat16)
    s2 = jnp.dot(h1, bf(w2), preferred_element_type=jnp.float32).astype(jnp.bfloat16)
    return jnp.dot(bf(adj), s2, preferred_element_type=jnp.float32) + b2


if __name__ == "__main__":
    def make_case(N, nfeat, nhid, nclass):
        key = jax.random.PRNGKey(0)
        kx, kadj, kw1, kb1, kw2, kb2 = jax.random.split(key, 6)

        x = jax.random.normal(kx, (N, nfeat), dtype=jnp.float32)

        # Symmetric row-normalized adjacency (dense), deterministic.
        a = (jax.random.uniform(kadj, (N, N)) < 0.1).astype(jnp.float32)
        a = jnp.maximum(a, a.T) + jnp.eye(N, dtype=jnp.float32)
        adj = a / jnp.sum(a, axis=1, keepdims=True)

        # Uniform init like GraphConvolution.reset_parameters.
        def uinit(k, shape, fan):
            bound = 1.0 / jnp.sqrt(fan)
            return jax.random.uniform(k, shape, minval=-bound, maxval=bound,
                                      dtype=jnp.float32)

        w1 = uinit(kw1, (nfeat, nhid), nhid)
        b1 = uinit(kb1, (nhid,), nhid)
        w2 = uinit(kw2, (nhid, nclass), nclass)
        b2 = uinit(kb2, (nclass,), nclass)
        return x, adj, w1, b1, w2, b2

    # Case 1: small shapes consistent with the module (single-tile grid).
    N, nfeat, nhid, nclass = 64, 32, 32, 16
    args = make_case(N, nfeat, nhid, nclass)
    out = jax.block_until_ready(gcn_forward(*args))
    assert out.shape == (N, nclass)
    ref_bf16 = gcn_reference_bf16(*args)
    assert jnp.allclose(out, ref_bf16, atol=2e-2, rtol=2e-2), \
        "case1: mismatch vs bf16-dataflow reference"
    ref_f32 = gcn_reference_f32(*args)
    assert jnp.allclose(out, ref_f32, atol=5e-2), "case1: mismatch vs f32 reference"

    # Case 2: non-multiple-of-128 dims + multi-tile grid (exercises padding,
    # multi-step k reduction and multiple row tiles).
    N2, nfeat2, nhid2, nclass2 = 300, 200, 64, 8
    args2 = make_case(N2, nfeat2, nhid2, nclass2)
    out2 = jax.block_until_ready(gcn_forward(*args2, tm=128, tk=128))
    assert out2.shape == (N2, nclass2)
    ref2 = gcn_reference_bf16(*args2)
    assert jnp.allclose(out2, ref2, atol=2e-2, rtol=2e-2), \
        "case2: mismatch vs bf16-dataflow reference"

    print("KERNEL_OK")
</pallas_src>

<mosaic_0001>
module attributes {stable_mosaic.version = 11 : i64} {
  func.func @_gcn_mm_kernel(%arg0: i32, %arg1: i32, %arg2: memref<128x128xbf16, #tpu.memory_space<vmem>>, %arg3: memref<128x128xbf16, #tpu.memory_space<vmem>>, %arg4: memref<128x128xbf16, #tpu.memory_space<vmem>>, %arg5: memref<128x128xf32, #tpu.memory_space<vmem>>) attributes {dimension_semantics = [#tpu.dimension_semantics<parallel>, #tpu.dimension_semantics<arbitrary>], iteration_bounds = array<i64: 1, 1>, scalar_prefetch = 0 : i64, scratch_operands = 1 : i64, tpu.core_type = #tpu.core_type<tc>, window_params = [{transform_indices = @transform_0, window_bounds = array<i64: 128, 128>}, {pipeline_mode = #tpu.pipeline_mode<synchronous>, transform_indices = @transform_1, window_bounds = array<i64: 128, 128>}, {transform_indices = @transform_2, window_bounds = array<i64: 128, 128>}]} {
    %c0_i32 = arith.constant 0 : i32
    %0 = arith.cmpi eq, %arg1, %c0_i32 : i32
    %1 = arith.extui %0 : i1 to i32
    %c0_i32_0 = arith.constant 0 : i32
    %2 = arith.cmpi ne, %1, %c0_i32_0 : i32
    scf.if %2 {
      %cst_9 = arith.constant 0.000000e+00 : f32
      %15 = vector.broadcast %cst_9 : f32 to vector<128x128xf32>
      %c0_10 = arith.constant 0 : index
      %c0_11 = arith.constant 0 : index
      %16 = vector.load %arg5[%c0_10, %c0_11] : memref<128x128xf32, #tpu.memory_space<vmem>>, vector<128x128xf32>
      tpu.vector_store %arg5[%c0_10, %c0_11], %15 {strides = array<i32>} : memref<128x128xf32, #tpu.memory_space<vmem>>, vector<128x128xf32>,
    } else {
    }
    %c128_i32 = arith.constant 128 : i32
    %3 = arith.muli %arg1, %c128_i32 : i32
    %4 = tpu.assume_multiple %3, 128 : i32
    %c0 = arith.constant 0 : index
    %c0_1 = arith.constant 0 : index
    %5 = vector.load %arg5[%c0, %c0_1] : memref<128x128xf32, #tpu.memory_space<vmem>>, vector<128x128xf32>
    %c0_2 = arith.constant 0 : index
    %c0_3 = arith.constant 0 : index
    %6 = vector.load %arg2[%c0_2, %c0_3] : memref<128x128xbf16, #tpu.memory_space<vmem>>, vector<128x128xbf16>
    %7 = arith.index_cast %4 : i32 to index
    %c0_4 = arith.constant 0 : index
    %8 = vector.load %arg3[%7, %c0_4] : memref<128x128xbf16, #tpu.memory_space<vmem>>, vector<128x128xbf16>
    %cst = arith.constant dense<0.000000e+00> : vector<128x128xf32>
    %9 = tpu.matmul %6, %8, %cst {dimension_numbers = #tpu.dot_dimension_numbers<[1], [0], [0], [1], [0, 0, 1, 1], [], []>} : vector<128x128xbf16>, vector<128x128xbf16>, vector<128x128xf32> -> vector<128x128xf32>
    %10 = arith.addf %5, %9 : vector<128x128xf32>
    %c0_5 = arith.constant 0 : index
    %c0_6 = arith.constant 0 : index
    %11 = vector.load %arg5[%c0_5, %c0_6] : memref<128x128xf32, #tpu.memory_space<vmem>>, vector<128x128xf32>
    tpu.vector_store %arg5[%c0_5, %c0_6], %10 {strides = array<i32>} : memref<128x128xf32, #tpu.memory_space<vmem>>, vector<128x128xf32>,
    %c0_i32_7 = arith.constant 0 : i32
    %12 = arith.cmpi eq, %arg1, %c0_i32_7 : i32
    %13 = arith.extui %12 : i1 to i32
    %c0_i32_8 = arith.constant 0 : i32
    %14 = arith.cmpi ne, %13, %c0_i32_8 : i32
    scf.if %14 {
      %c0_9 = arith.constant 0 : index
      %c0_10 = arith.constant 0 : index
      %15 = vector.load %arg5[%c0_9, %c0_10] : memref<128x128xf32, #tpu.memory_space<vmem>>, vector<128x128xf32>
      %16 = arith.truncf %15 : vector<128x128xf32> to vector<128x128xbf16>
      %c0_11 = arith.constant 0 : index
      %c0_12 = arith.constant 0 : index
      %17 = vector.load %arg4[%c0_11, %c0_12] : memref<128x128xbf16, #tpu.memory_space<vmem>>, vector<128x128xbf16>
      tpu.vector_store %arg4[%c0_11, %c0_12], %16 {strides = array<i32>} : memref<128x128xbf16, #tpu.memory_space<vmem>>, vector<128x128xbf16>,
    } else {
    }
    return
  }
  func.func @transform_0(%arg0: i32, %arg1: i32) -> (i32, i32) {
    %c0_i32 = arith.constant 0 : i32
    return %arg0, %arg1 : i32, i32
  }
  func.func @transform_1(%arg0: i32, %arg1: i32) -> (i32, i32) {
    %c0_i32 = arith.constant 0 : i32
    %c0_i32_0 = arith.constant 0 : i32
    %c0_i32_1 = arith.constant 0 : i32
    return %c0_i32, %c0_i32_0 : i32, i32
  }
  func.func @transform_2(%arg0: i32, %arg1: i32) -> (i32, i32) {
    %c0_i32 = arith.constant 0 : i32
    %c0_i32_0 = arith.constant 0 : i32
    return %arg0, %c0_i32 : i32, i32
  }
}

</mosaic_0001>

<llo_original>
// kernel: tpu_custom_call.1
$region0: #{tpu_custom_call.1}
  #allocation0 [shape = 'u32[]', space=smem, size = 0x4, offset = 0x4, fixed_abs, tag = 'smem constant byte address 0x4 - core index']
  #allocation1 [shape = 'u32[144,128]{1,0:T(1,128)}', space=vmem, size = 0x12000, scoped, tag = 'internal scratch']
  #allocation2 [shape = 'f32[128,128]{1,0:T(8,128)}', space=vmem, size = 0x10000, scoped, tag = 'scratch operand']
  %s0 = inlined_call_operand.hbm [shape: bf16[128,128], index: 0, kind: input, shape index: {}]
  %s1 = inlined_call_operand.hbm [shape: bf16[128,128], index: 1, kind: input, shape index: {}]
  %s2 = inlined_call_operand.hbm [shape: bf16[128,128], index: 2, kind: output, shape index: {}]
  %s3 = sld [smem:[#allocation0]]
  $region34: #{tpu_custom_call.1} parent=0
    _
  %s5 = ssub.s32 1, %s3
  %s6 = scalar_select 0, %s5, %s3
  $region1: #{tpu_custom_call.1} parent=0
    #allocation3 [shape = 'u8[32768]{0}', space=vmem, size = 0x8000, scoped, tag = 'input window, operand 0, single buffered']
    #allocation4 [shape = 's32[1]{0}', space=sflag, size = 0x4, scoped, tag = 'scoped memory for tpu_custom_call.1']
    #allocation5 [shape = 's32[1]{0}', space=sflag, size = 0x4, scoped, tag = 'scoped memory for tpu_custom_call.1']
    #allocation6 [shape = 'u8[32768]{0}', space=vmem, size = 0x8000, scoped, tag = 'input window, operand 1, single buffered']
    #allocation7 [shape = 's32[1]{0}', space=sflag, size = 0x4, scoped, tag = 'scoped memory for tpu_custom_call.1']
    #allocation8 [shape = 'u8[32768]{0}', space=vmem, size = 0x8000, scoped, tag = 'output window, operand 0, single buffered']
    %7 = vsyncpa [#allocation4], 0
    %8 = vsyncpa [#allocation7], 0
    %9 = vsyncpa [#allocation5], 0
    // Predicated region
    $region2: #{tpu_custom_call.1} parent=1 // pred_check
      _
    $region3: #{tpu_custom_call.1} parent=1 // pred_check_branch
      %11 = sbr.rel (0) target = $region5
    $region4: #{tpu_custom_call.1} parent=1 // pred_region
      %s13 = ssub.s32 1024, 1024
      %14 = vsyncadd [#allocation4], %s13
      %s15 = sshll.u32 [#allocation3], 4
      %s16 = int_to_ptr.vmem [resolvable:$true] %s15
      %21 = dma.hbm_to_vmem [thread:$0]  %s0, 1024, %s16, [#allocation4], 64, 64, 4
    $region5: #{tpu_custom_call.1} parent=1 // pred_fallthru
      _
    // Predicated region
    $region6: #{tpu_custom_call.1} parent=1 // pred_check
      _
    $region7: #{tpu_custom_call.1} parent=1 // pred_check_branch
      %23 = sbr.rel (0) target = $region9
    $region8: #{tpu_custom_call.1} parent=1 // pred_region
      %s25 = ssub.s32 1024, 1024
      %26 = vsyncadd [#allocation7], %s25
      %s27 = sshll.u32 [#allocation6], 4
      %s28 = int_to_ptr.vmem [resolvable:$true] %s27
      %33 = dma.hbm_to_vmem [thread:$0]  %s1, 1024, %s28, [#allocation7], 64, 64, 4
    $region9: #{tpu_custom_call.1} parent=1 // pred_fallthru
      _
    // Predicated region
    $region10: #{tpu_custom_call.1} parent=1 // pred_check
      _
    $region11: #{tpu_custom_call.1} parent=1 // pred_check_branch
      %35 = sbr.rel (0) target = $region13
    $region12: #{tpu_custom_call.1} parent=1 // pred_region
      %36 = dma.done [#allocation4], 1024
    $region13: #{tpu_custom_call.1} parent=1 // pred_fallthru
      _
    // Predicated region
    $region14: #{tpu_custom_call.1} parent=1 // pred_check
      _
    $region15: #{tpu_custom_call.1} parent=1 // pred_check_branch
      %38 = sbr.rel (0) target = $region17
    $region16: #{tpu_custom_call.1} parent=1 // pred_region
      %39 = dma.done [#allocation7], 1024
    $region17: #{tpu_custom_call.1} parent=1 // pred_fallthru
      _
    %p41 = scmp.eq.s32.totalorder 0, 0
    // Predicated region
    $region18: #{tpu_custom_call.1} parent=1 // pred_check
      %p42 = pneg %p41
    $region19: #{tpu_custom_call.1} parent=1 // pred_check_branch
      %44 = sbr.rel (%p42) target = $region21
    $region20: #{tpu_custom_call.1} parent=1 // pred_region
      %45 = vst [vmem:[#allocation2] sm:$0xff] 0.0
      %46 = vst [vmem:[#allocation2 + $0x8] sm:$0xff] 0.0
      %47 = vst [vmem:[#allocation2 + $0x10] sm:$0xff] 0.0
      %48 = vst [vmem:[#allocation2 + $0x18] sm:$0xff] 0.0
      %49 = vst [vmem:[#allocation2 + $0x20] sm:$0xff] 0.0
      %50 = vst [vmem:[#allocation2 + $0x28] sm:$0xff] 0.0
      %51 = vst [vmem:[#allocation2 + $0x30] sm:$0xff] 0.0
      %52 = vst [vmem:[#allocation2 + $0x38] sm:$0xff] 0.0
      %53 = vst [vmem:[#allocation2 + $0x40] sm:$0xff] 0.0
      %54 = vst [vmem:[#allocation2 + $0x48] sm:$0xff] 0.0
      %55 = vst [vmem:[#allocation2 + $0x50] sm:$0xff] 0.0
      %56 = vst [vmem:[#allocation2 + $0x58] sm:$0xff] 0.0
      %57 = vst [vmem:[#allocation2 + $0x60] sm:$0xff] 0.0
      %58 = vst [vmem:[#allocation2 + $0x68] sm:$0xff] 0.0
      %59 = vst [vmem:[#allocation2 + $0x70] sm:$0xff] 0.0
      %60 = vst [vmem:[#allocation2 + $0x78] sm:$0xff] 0.0
    $region21: #{tpu_custom_call.1} parent=1 // pred_fallthru
      _
    %s61 = smul.u32 0, 128
    %v62 = vld [vmem:[#allocation2] sm:$0xff]
    %v63 = vld [vmem:[#allocation2 + $0x8] sm:$0xff]
    %v64 = vld [vmem:[#allocation2 + $0x10] sm:$0xff]
    %v65 = vld [vmem:[#allocation2 + $0x18] sm:$0xff]
    %v66 = vld [vmem:[#allocation2 + $0x20] sm:$0xff]
    %v67 = vld [vmem:[#allocation2 + $0x28] sm:$0xff]
    %v68 = vld [vmem:[#allocation2 + $0x30] sm:$0xff]
    %v69 = vld [vmem:[#allocation2 + $0x38] sm:$0xff]
    %v70 = vld [vmem:[#allocation2 + $0x40] sm:$0xff]
    %v71 = vld [vmem:[#allocation2 + $0x48] sm:$0xff]
    %v72 = vld [vmem:[#allocation2 + $0x50] sm:$0xff]
    %v73 = vld [vmem:[#allocation2 + $0x58] sm:$0xff]
    %v74 = vld [vmem:[#allocation2 + $0x60] sm:$0xff]
    %v75 = vld [vmem:[#allocation2 + $0x68] sm:$0xff]
    %v76 = vld [vmem:[#allocation2 + $0x70] sm:$0xff]
    %v77 = vld [vmem:[#allocation2 + $0x78] sm:$0xff]
    %v78 = vld [vmem:[#allocation3] sm:$0xf]
    %v79 = vld [vmem:[#allocation3 + $0x4] sm:$0xf]
    %v80 = vld [vmem:[#allocation3 + $0x8] sm:$0xf]
    %v81 = vld [vmem:[#allocation3 + $0xc] sm:$0xf]
    %v82 = vld [vmem:[#allocation3 + $0x10] sm:$0xf]
    %v83 = vld [vmem:[#allocation3 + $0x14] sm:$0xf]
    %v84 = vld [vmem:[#allocation3 + $0x18] sm:$0xf]
    %v85 = vld [vmem:[#allocation3 + $0x1c] sm:$0xf]
    %v86 = vld [vmem:[#allocation3 + $0x20] sm:$0xf]
    %v87 = vld [vmem:[#allocation3 + $0x24] sm:$0xf]
    %v88 = vld [vmem:[#allocation3 + $0x28] sm:$0xf]
    %v89 = vld [vmem:[#allocation3 + $0x2c] sm:$0xf]
    %v90 = vld [vmem:[#allocation3 + $0x30] sm:$0xf]
    %v91 = vld [vmem:[#allocation3 + $0x34] sm:$0xf]
    %v92 = vld [vmem:[#allocation3 + $0x38] sm:$0xf]
    %v93 = vld [vmem:[#allocation3 + $0x3c] sm:$0xf]
    %s94 = sshra.s32 %s61, 3
    %s95 = sand.u32 %s61, 7
    %s96 = smul.addr %s94, 4
    %s97 = scalar_lea.vmem [#allocation6], %s96
    %v98 = vld [vmem:[%s97] sm:$0xf]
    %v99 = vld [vmem:[%s97 + $0x4] sm:$0xf]
    %v100 = vld [vmem:[%s97 + $0x8] sm:$0xf]
    %v101 = vld [vmem:[%s97 + $0xc] sm:$0xf]
    %v102 = vld [vmem:[%s97 + $0x10] sm:$0xf]
    %v103 = vld [vmem:[%s97 + $0x14] sm:$0xf]
    %v104 = vld [vmem:[%s97 + $0x18] sm:$0xf]
    %v105 = vld [vmem:[%s97 + $0x1c] sm:$0xf]
    %v106 = vld [vmem:[%s97 + $0x20] sm:$0xf]
    %v107 = vld [vmem:[%s97 + $0x24] sm:$0xf]
    %v108 = vld [vmem:[%s97 + $0x28] sm:$0xf]
    %v109 = vld [vmem:[%s97 + $0x2c] sm:$0xf]
    %v110 = vld [vmem:[%s97 + $0x30] sm:$0xf]
    %v111 = vld [vmem:[%s97 + $0x34] sm:$0xf]
    %v112 = vld [vmem:[%s97 + $0x38] sm:$0xf]
    %v113 = vld [vmem:[%s97 + $0x3c] sm:$0xf]
    %v130 = vunpack.c.l.b16 %v78
    %v131 = vunpack.c.l.b16 %v79
    %v132 = vunpack.c.l.b16 %v80
    %v133 = vunpack.c.l.b16 %v81
    %v134 = vunpack.c.l.b16 %v82
    %v135 = vunpack.c.l.b16 %v83
    %v136 = vunpack.c.l.b16 %v84
    %v137 = vunpack.c.l.b16 %v85
    %v138 = vunpack.c.l.b16 %v86
    %v139 = vunpack.c.l.b16 %v87
    %v140 = vunpack.c.l.b16 %v88
    %v141 = vunpack.c.l.b16 %v89
    %v142 = vunpack.c.l.b16 %v90
    %v143 = vunpack.c.l.b16 %v91
    %v144 = vunpack.c.l.b16 %v92
    %v145 = vunpack.c.l.b16 %v93
    %v146 = vpack.c.b16 %v131, %v130
    %v147 = vpack.c.b16 %v133, %v132
    %v148 = vpack.c.b16 %v135, %v134
    %v149 = vpack.c.b16 %v137, %v136
    %v150 = vpack.c.b16 %v139, %v138
    %v151 = vpack.c.b16 %v141, %v140
    %v152 = vpack.c.b16 %v143, %v142
    %v153 = vpack.c.b16 %v145, %v144
    %v178 = vunpack.c.l.b16 %v98
    %v179 = vunpack.c.l.b16 %v99
    %v180 = vunpack.c.l.b16 %v100
    %v181 = vunpack.c.l.b16 %v101
    %v182 = vunpack.c.l.b16 %v102
    %v183 = vunpack.c.l.b16 %v103
    %v184 = vunpack.c.l.b16 %v104
    %v185 = vunpack.c.l.b16 %v105
    %v186 = vunpack.c.l.b16 %v106
    %v187 = vunpack.c.l.b16 %v107
    %v188 = vunpack.c.l.b16 %v108
    %v189 = vunpack.c.l.b16 %v109
    %v190 = vunpack.c.l.b16 %v110
    %v191 = vunpack.c.l.b16 %v111
    %v192 = vunpack.c.l.b16 %v112
    %v193 = vunpack.c.l.b16 %v113
    %v194 = vpack.c.b16 %v179, %v178
    %v195 = vpack.c.b16 %v181, %v180
    %v196 = vpack.c.b16 %v183, %v182
    %v197 = vpack.c.b16 %v185, %v184
    %v198 = vpack.c.b16 %v187, %v186
    %v199 = vpack.c.b16 %v189, %v188
    %v200 = vpack.c.b16 %v191, %v190
    %v201 = vpack.c.b16 %v193, %v192
    %210 = vmatprep.subr.bf16.mxu0 0
    %211 = vmatpush1.bf16.msra.mxu0 %v201
    %212 = vmatprep.subr.bf16.mxu0 0
    %213 = vmatpush1.bf16.msra.mxu0 %v200
    %214 = vmatprep.subr.bf16.mxu0 0
    %215 = vmatpush1.bf16.msra.mxu0 %v199
    %216 = vmatprep.subr.bf16.mxu0 0
    %217 = vmatpush1.bf16.msra.mxu0 %v198
    %218 = vmatprep.subr.bf16.mxu0 0
    %219 = vmatpush1.bf16.msra.mxu0 %v197
    %220 = vmatprep.subr.bf16.mxu0 0
    %221 = vmatpush1.bf16.msra.mxu0 %v196
    %222 = vmatprep.subr.bf16.mxu0 0
    %223 = vmatpush1.bf16.msra.mxu0 %v195
    %224 = vmatprep.subr.bf16.mxu0 0
    %225 = vmatpush1.bf16.msra.mxu0 %v194
    %226 = vmatprep.subr.bf16.mxu0 0
    %227 = vmatpush2.bf16.msra.mxu0 0
    %228 = vmatprep.subr.bf16.mxu0 0
    %229 = vmatpush2.bf16.msra.mxu0 0
    %230 = vmatprep.subr.bf16.mxu0 0
    %231 = vmatpush2.bf16.msra.mxu0 0
    %232 = vmatprep.subr.bf16.mxu0 0
    %233 = vmatpush2.bf16.msra.mxu0 0
    %234 = vmatprep.subr.bf16.mxu0 0
    %235 = vmatpush2.bf16.msra.mxu0 0
    %236 = vmatprep.subr.bf16.mxu0 0
    %237 = vmatpush2.bf16.msra.mxu0 0
    %238 = vmatprep.subr.bf16.mxu0 0
    %239 = vmatpush2.bf16.msra.mxu0 0
    %240 = vmatprep.subr.bf16.mxu0 0
    %241 = vmatpush2.bf16.msra.mxu0 0
    %242 = vmatprep.mubr.bf16.mxu0 0
    %243 = vmatmul.mubr.bf16.gmra.mxu0 %v146
    %v244 = vpop.f32.mrf.mxu0
    %v245 = vadd.f32 0.0, %v244
    %v246 = vpop.f32.mrf.mxu0
    %v247 = vpop.f32.mrf.mxu0
    %v248 = vadd.f32 0.0, %v247
    %v249 = vpop.f32.mrf.mxu0
    %250 = vmatprep.mubr.bf16.mxu0 0
    %251 = vmatmul.mubr.bf16.gmra.mxu0 %v147
    %v252 = vpop.f32.mrf.mxu0
    %v253 = vadd.f32 0.0, %v252
    %v254 = vpop.f32.mrf.mxu0
    %v255 = vpop.f32.mrf.mxu0
    %v256 = vadd.f32 0.0, %v255
    %v257 = vpop.f32.mrf.mxu0
    %258 = vmatprep.mubr.bf16.mxu0 0
    %259 = vmatmul.mubr.bf16.gmra.mxu0 %v148
    %v260 = vpop.f32.mrf.mxu0
    %v261 = vadd.f32 0.0, %v260
    %v262 = vpop.f32.mrf.mxu0
    %v263 = vpop.f32.mrf.mxu0
    %v264 = vadd.f32 0.0, %v263
    %v265 = vpop.f32.mrf.mxu0
    %266 = vmatprep.mubr.bf16.mxu0 0
    %267 = vmatmul.mubr.bf16.gmra.mxu0 %v149
    %v268 = vpop.f32.mrf.mxu0
    %v269 = vadd.f32 0.0, %v268
    %v270 = vpop.f32.mrf.mxu0
    %v271 = vpop.f32.mrf.mxu0
    %v272 = vadd.f32 0.0, %v271
    %v273 = vpop.f32.mrf.mxu0
    %274 = vmatprep.mubr.bf16.mxu0 0
    %275 = vmatmul.mubr.bf16.gmra.mxu0 %v150
    %v276 = vpop.f32.mrf.mxu0
    %v277 = vadd.f32 0.0, %v276
    %v278 = vpop.f32.mrf.mxu0
    %v279 = vpop.f32.mrf.mxu0
    %v280 = vadd.f32 0.0, %v279
    %v281 = vpop.f32.mrf.mxu0
    %282 = vmatprep.mubr.bf16.mxu0 0
    %283 = vmatmul.mubr.bf16.gmra.mxu0 %v151
    %v284 = vpop.f32.mrf.mxu0
    %v285 = vadd.f32 0.0, %v284
    %v286 = vpop.f32.mrf.mxu0
    %v287 = vpop.f32.mrf.mxu0
    %v288 = vadd.f32 0.0, %v287
    %v289 = vpop.f32.mrf.mxu0
    %290 = vmatprep.mubr.bf16.mxu0 0
    %291 = vmatmul.mubr.bf16.gmra.mxu0 %v152
    %v292 = vpop.f32.mrf.mxu0
    %v293 = vadd.f32 0.0, %v292
    %v294 = vpop.f32.mrf.mxu0
    %v295 = vpop.f32.mrf.mxu0
    %v296 = vadd.f32 0.0, %v295
    %v297 = vpop.f32.mrf.mxu0
    %298 = vmatprep.mubr.bf16.mxu0 0
    %299 = vmatmul.mubr.bf16.gmra.mxu0 %v153
    %v300 = vpop.f32.mrf.mxu0
    %v301 = vadd.f32 0.0, %v300
    %v302 = vpop.f32.mrf.mxu0
    %v303 = vpop.f32.mrf.mxu0
    %v304 = vadd.f32 0.0, %v303
    %v305 = vpop.f32.mrf.mxu0
    %306 = vdwg.mxu0
    %v307 = vadd.f32 %v62, %v245
    %v308 = vadd.f32 %v63, %v248
    %v309 = vadd.f32 %v64, %v253
    %v310 = vadd.f32 %v65, %v256
    %v311 = vadd.f32 %v66, %v261
    %v312 = vadd.f32 %v67, %v264
    %v313 = vadd.f32 %v68, %v269
    %v314 = vadd.f32 %v69, %v272
    %v315 = vadd.f32 %v70, %v277
    %v316 = vadd.f32 %v71, %v280
    %v317 = vadd.f32 %v72, %v285
    %v318 = vadd.f32 %v73, %v288
    %v319 = vadd.f32 %v74, %v293
    %v320 = vadd.f32 %v75, %v296
    %v321 = vadd.f32 %v76, %v301
    %v322 = vadd.f32 %v77, %v304
    %323 = vst [vmem:[#allocation2] sm:$0xff] %v307
    %324 = vst [vmem:[#allocation2 + $0x8] sm:$0xff] %v308
    %325 = vst [vmem:[#allocation2 + $0x10] sm:$0xff] %v309
    %326 = vst [vmem:[#allocation2 + $0x18] sm:$0xff] %v310
    %327 = vst [vmem:[#allocation2 + $0x20] sm:$0xff] %v311
    %328 = vst [vmem:[#allocation2 + $0x28] sm:$0xff] %v312
    %329 = vst [vmem:[#allocation2 + $0x30] sm:$0xff] %v313
    %330 = vst [vmem:[#allocation2 + $0x38] sm:$0xff] %v314
    %331 = vst [vmem:[#allocation2 + $0x40] sm:$0xff] %v315
    %332 = vst [vmem:[#allocation2 + $0x48] sm:$0xff] %v316
    %333 = vst [vmem:[#allocation2 + $0x50] sm:$0xff] %v317
    %334 = vst [vmem:[#allocation2 + $0x58] sm:$0xff] %v318
    %335 = vst [vmem:[#allocation2 + $0x60] sm:$0xff] %v319
    %336 = vst [vmem:[#allocation2 + $0x68] sm:$0xff] %v320
    %337 = vst [vmem:[#allocation2 + $0x70] sm:$0xff] %v321
    %338 = vst [vmem:[#allocation2 + $0x78] sm:$0xff] %v322
    // Predicated region
    $region22: #{tpu_custom_call.1} parent=1 // pred_check
      %p339 = pneg %p41
    $region23: #{tpu_custom_call.1} parent=1 // pred_check_branch
      %341 = sbr.rel (%p339) target = $region25
    $region24: #{tpu_custom_call.1} parent=1 // pred_region
      %v342 = vld [vmem:[#allocation2] sm:$0xff]
      %v343 = vld [vmem:[#allocation2 + $0x8] sm:$0xff]
      %v344 = vld [vmem:[#allocation2 + $0x10] sm:$0xff]
      %v345 = vld [vmem:[#allocation2 + $0x18] sm:$0xff]
      %v346 = vld [vmem:[#allocation2 + $0x20] sm:$0xff]
      %v347 = vld [vmem:[#allocation2 + $0x28] sm:$0xff]
      %v348 = vld [vmem:[#allocation2 + $0x30] sm:$0xff]
      %v349 = vld [vmem:[#allocation2 + $0x38] sm:$0xff]
      %v350 = vld [vmem:[#allocation2 + $0x40] sm:$0xff]
      %v351 = vld [vmem:[#allocation2 + $0x48] sm:$0xff]
      %v352 = vld [vmem:[#allocation2 + $0x50] sm:$0xff]
      %v353 = vld [vmem:[#allocation2 + $0x58] sm:$0xff]
      %v354 = vld [vmem:[#allocation2 + $0x60] sm:$0xff]
      %v355 = vld [vmem:[#allocation2 + $0x68] sm:$0xff]
      %v356 = vld [vmem:[#allocation2 + $0x70] sm:$0xff]
      %v357 = vld [vmem:[#allocation2 + $0x78] sm:$0xff]
      %v358 = vpack.c.bf16 %v343, %v342
      %v359 = vpack.c.bf16 %v345, %v344
      %v360 = vpack.c.bf16 %v347, %v346
      %v361 = vpack.c.bf16 %v349, %v348
      %v362 = vpack.c.bf16 %v351, %v350
      %v363 = vpack.c.bf16 %v353, %v352
      %v364 = vpack.c.bf16 %v355, %v354
      %v365 = vpack.c.bf16 %v357, %v356
      %v374 = vunpack.c.l.b16 %v358
      %v375 = vunpack.c.h.b16 %v358
      %v376 = vunpack.c.l.b16 %v359
      %v377 = vunpack.c.h.b16 %v359
      %v378 = vunpack.c.l.b16 %v360
      %v379 = vunpack.c.h.b16 %v360
      %v380 = vunpack.c.l.b16 %v361
      %v381 = vunpack.c.h.b16 %v361
      %v382 = vunpack.c.l.b16 %v362
      %v383 = vunpack.c.h.b16 %v362
      %v384 = vunpack.c.l.b16 %v363
      %v385 = vunpack.c.h.b16 %v363
      %v386 = vunpack.c.l.b16 %v364
      %v387 = vunpack.c.h.b16 %v364
      %v388 = vunpack.c.l.b16 %v365
      %v389 = vunpack.c.h.b16 %v365
      %v390 = vpack.c.b16 %v374, %v374
      %v391 = vpack.c.b16 %v375, %v375
      %v392 = vpack.c.b16 %v376, %v376
      %v393 = vpack.c.b16 %v377, %v377
      %v394 = vpack.c.b16 %v378, %v378
      %v395 = vpack.c.b16 %v379, %v379
      %v396 = vpack.c.b16 %v380, %v380
      %v397 = vpack.c.b16 %v381, %v381
      %v398 = vpack.c.b16 %v382, %v382
      %v399 = vpack.c.b16 %v383, %v383
      %v400 = vpack.c.b16 %v384, %v384
      %v401 = vpack.c.b16 %v385, %v385
      %v402 = vpack.c.b16 %v386, %v386
      %v403 = vpack.c.b16 %v387, %v387
      %v404 = vpack.c.b16 %v388, %v388
      %v405 = vpack.c.b16 %v389, %v389
      %422 = vst [vmem:[#allocation8] sm:$0xf] %v390
      %423 = vst [vmem:[#allocation8 + $0x4] sm:$0xf] %v391
      %424 = vst [vmem:[#allocation8 + $0x8] sm:$0xf] %v392
      %425 = vst [vmem:[#allocation8 + $0xc] sm:$0xf] %v393
      %426 = vst [vmem:[#allocation8 + $0x10] sm:$0xf] %v394
      %427 = vst [vmem:[#allocation8 + $0x14] sm:$0xf] %v395
      %428 = vst [vmem:[#allocation8 + $0x18] sm:$0xf] %v396
      %429 = vst [vmem:[#allocation8 + $0x1c] sm:$0xf] %v397
      %430 = vst [vmem:[#allocation8 + $0x20] sm:$0xf] %v398
      %431 = vst [vmem:[#allocation8 + $0x24] sm:$0xf] %v399
      %432 = vst [vmem:[#allocation8 + $0x28] sm:$0xf] %v400
      %433 = vst [vmem:[#allocation8 + $0x2c] sm:$0xf] %v401
      %434 = vst [vmem:[#allocation8 + $0x30] sm:$0xf] %v402
      %435 = vst [vmem:[#allocation8 + $0x34] sm:$0xf] %v403
      %436 = vst [vmem:[#allocation8 + $0x38] sm:$0xf] %v404
      %437 = vst [vmem:[#allocation8 + $0x3c] sm:$0xf] %v405
    $region25: #{tpu_custom_call.1} parent=1 // pred_fallthru
      _
    // Predicated region
    $region26: #{tpu_custom_call.1} parent=1 // pred_check
      _
    $region27: #{tpu_custom_call.1} parent=1 // pred_check_branch
      %439 = sbr.rel (0) target = $region29
    $region28: #{tpu_custom_call.1} parent=1 // pred_region
      %s441 = ssub.s32 1024, 1024
      %442 = vsyncadd [#allocation5], %s441
      %s443 = sshll.u32 [#allocation8], 4
      %s444 = int_to_ptr.vmem [resolvable:$true] %s443
      %449 = dma.vmem_to_hbm [thread:$0]  %s444, 1024, %s2, [#allocation5], 64, 64, 4
    $region29: #{tpu_custom_call.1} parent=1 // pred_fallthru
      _
    // Predicated region
    $region30: #{tpu_custom_call.1} parent=1 // pred_check
      _
    $region31: #{tpu_custom_call.1} parent=1 // pred_check_branch
      %451 = sbr.rel (0) target = $region33
    $region32: #{tpu_custom_call.1} parent=1 // pred_region
      %452 = dma.done [#allocation5], 1024
    $region33: #{tpu_custom_call.1} parent=1 // pred_fallthru
      _
    %453 = vsyncpa [#allocation4], 1
    %454 = vsyncpa [#allocation7], 1
    %455 = vsyncpa [#allocation5], 1

</llo_original>
